<compile_context>
chip_gen: v7x
topology: tpu7x:2x2x1
jax: 0.10.0
libtpu: 0.0.40
codegen_flags: <defaults>
</compile_context>

<pallas_src>
import jax
import jax.numpy as jnp
from jax.experimental import pallas as pl
from jax.experimental.pallas import tpu as pltpu

LANE = 128  # pad all feature dims to one full vreg lane width


# ----------------------------- padding helpers ------------------------------

def _pad_cols(x, cols):
    pad = cols - x.shape[-1]
    if pad <= 0:
        return x
    return jnp.pad(x, [(0, 0)] * (x.ndim - 1) + [(0, pad)])


def _pad_rows(x, rows):
    pad = rows - x.shape[0]
    if pad <= 0:
        return x
    return jnp.pad(x, [(0, pad)] + [(0, 0)] * (x.ndim - 1))


# ------------------------------ fused kernel --------------------------------

def make_fused_kernel(num_layers, n_nodes):
    """Fused forward: all GraphConv layers + ReLU + mean_nodes + readout MLP.

    Ref order: adj(bf16 [N,N]), x(f32 [N,128]), w_stack(bf16 [P,128,128]),
               b_stack(f32 [P,1,128]), hg_out(f32 [1,128]), h_out(f32 [N,128]).
    """
    inv_n = 1.0 / float(n_nodes)

    def kernel(adj_ref, x_ref, w_ref, b_ref, hg_ref, h_ref):
        adj = adj_ref[...]                         # bf16 [N, N], pre-cast in wrapper
        h = x_ref[...]                             # f32  [N, LANE]

        for i in range(num_layers):
            w = w_ref[i]                           # bf16 [LANE, LANE] (zero padded)
            b = b_ref[i]                           # f32  [1, LANE]    (zero padded)
            # Â @ (H @ W): bf16 MXU inputs, f32 accumulation.
            z = jnp.dot(h.astype(jnp.bfloat16), w,
                        preferred_element_type=jnp.float32)
            y = jnp.dot(adj, z.astype(jnp.bfloat16),
                        preferred_element_type=jnp.float32)
            h = jnp.maximum(y + b, 0.0)            # bias + ReLU in f32
            # TODO(synk): training-mode dropout (F.dropout, p=0.5) omitted -- eval.

        h_ref[...] = h                             # lane-dense [N, LANE] store

        # dgl.mean_nodes over the single graph (sublane reduce, divide by true N).
        hg = jnp.sum(h, axis=0, keepdims=True) * inv_n          # f32 [1, LANE]

        rw1 = w_ref[num_layers]                    # bf16 [LANE, LANE]
        rb1 = b_ref[num_layers]                    # f32  [1, LANE]
        rw2 = w_ref[num_layers + 1]
        rb2 = b_ref[num_layers + 1]
        r1 = jnp.maximum(
            jnp.dot(hg.astype(jnp.bfloat16), rw1,
                    preferred_element_type=jnp.float32) + rb1, 0.0)
        hg_ref[...] = (jnp.dot(r1.astype(jnp.bfloat16), rw2,
                               preferred_element_type=jnp.float32) + rb2)

    return kernel


# ------------------------------ JAX wrapper ----------------------------------

def gcn_forward(params, adj_norm, x):
    """Returns (readout(mean_nodes(h)), h) exactly like the PyTorch module (eval)."""
    n = adj_norm.shape[0]
    num_layers = len(params["gcn"])
    out_features = params["gcn"][-1][0].shape[1]
    n_mats = num_layers + 2                        # GCN weights + 2 readout linears

    # Lane-pad + pack everything once, outside the kernel. Zero padding keeps the
    # math exact: padded h columns only ever hit zero-padded weight rows, padded
    # bias columns are zero, and the mean divides by the true N.
    x_p = _pad_cols(x.astype(jnp.float32), LANE)
    adj_bf = adj_norm.astype(jnp.bfloat16)         # bf16 Â: half the DMA + VMEM bytes

    w_stack = jnp.stack(
        [_pad_cols(_pad_rows(w.astype(jnp.float32), LANE), LANE)
         for (w, _) in params["gcn"] + params["readout"]]
    ).astype(jnp.bfloat16)                         # [P, 128, 128] bf16
    b_stack = jnp.stack(
        [_pad_cols(b.astype(jnp.float32), LANE)
         for (_, b) in params["gcn"] + params["readout"]]
    )                                              # [P, 1, 128] f32

    kernel = make_fused_kernel(num_layers, n)

    # Advisory cost hint for XLA's scheduler.
    flops = num_layers * (2 * n * n * LANE + 2 * n * LANE * LANE) + 2 * 2 * LANE * LANE
    bytes_accessed = (2 * n * n                       # bf16 Â
                      + 4 * n * LANE                  # f32 x
                      + 2 * n_mats * LANE * LANE      # bf16 weight stack
                      + 4 * n_mats * LANE             # f32 bias stack
                      + 4 * (n + 1) * LANE)           # f32 outputs

    # Explicit scoped-VMEM limit: lets the fused whole-array path scale well past the
    # 16/32 MiB defaults while staying under v7x's 64 MiB physical VMEM.
    vmem_limit_bytes = 56 * 1024 * 1024

    hg_p, h_p = pl.pallas_call(
        kernel,
        out_shape=(jax.ShapeDtypeStruct((1, LANE), jnp.float32),
                   jax.ShapeDtypeStruct((n, LANE), jnp.float32)),
        in_specs=[pl.BlockSpec(memory_space=pltpu.MemorySpace.VMEM)] * 4,
        out_specs=(pl.BlockSpec(memory_space=pltpu.MemorySpace.VMEM),
                   pl.BlockSpec(memory_space=pltpu.MemorySpace.VMEM)),
        compiler_params=pltpu.CompilerParams(vmem_limit_bytes=vmem_limit_bytes),
        cost_estimate=pl.CostEstimate(flops=flops, transcendentals=0,
                                      bytes_accessed=bytes_accessed),
    )(adj_bf, x_p, w_stack, b_stack)

    return hg_p[:, :out_features], h_p[:, :out_features]


# ------------------------------ params / reference ---------------------------

def init_params(key, in_features, hidden_features, out_features, num_layers):
    """Deterministic parameter init mirroring the module's __init__ shapes."""
    params = {"gcn": [], "readout": []}
    dims = [in_features] + [hidden_features] * (num_layers - 1) + [out_features]
    for i in range(num_layers):
        key, kw = jax.random.split(key)
        fan_in, fan_out = dims[i], dims[i + 1]
        limit = jnp.sqrt(6.0 / (fan_in + fan_out))            # xavier_uniform (DGL)
        w = jax.random.uniform(kw, (fan_in, fan_out), jnp.float32, -limit, limit)
        b = jnp.zeros((1, fan_out), jnp.float32)              # DGL GraphConv bias = 0
        params["gcn"].append((w, b))
    for _ in range(2):                                        # readout: Linear, Linear
        key, kw, kb = jax.random.split(key, 3)
        limit = 1.0 / jnp.sqrt(out_features)
        w = jax.random.uniform(kw, (out_features, out_features), jnp.float32,
                               -limit, limit)
        b = jax.random.uniform(kb, (1, out_features), jnp.float32, -limit, limit)
        params["readout"].append((w, b))
    return params


def gcn_forward_ref(params, adj_norm, x):
    """Pure-JAX f32 reference (eval mode) for a sanity check."""
    h = x
    for (w, b) in params["gcn"]:
        h = jnp.maximum(adj_norm @ (h @ w) + b, 0.0)
    hg = jnp.mean(h, axis=0, keepdims=True)
    (w1, b1), (w2, b2) = params["readout"]
    out = jnp.maximum(hg @ w1 + b1, 0.0) @ w2 + b2
    return out, h


# --------------------------------- main --------------------------------------

if __name__ == "__main__":
    N = 16                 # nodes in the (single) graph
    in_features = 8
    hidden_features = 32
    out_features = 16
    num_layers = 2

    key = jax.random.PRNGKey(0)
    key, k_adj, k_x, k_p = jax.random.split(key, 4)

    # Deterministic synthetic graph: symmetric binary adjacency with self-loops
    # (nonzero degrees), then symmetric normalization Â = D^-1/2 A D^-1/2 in f32.
    a = (jax.random.uniform(k_adj, (N, N)) < 0.3).astype(jnp.float32)
    a = jnp.maximum(a, a.T)
    a = jnp.maximum(a, jnp.eye(N, dtype=jnp.float32))
    deg = jnp.sum(a, axis=1)
    d_inv_sqrt = 1.0 / jnp.sqrt(deg)
    adj_norm = a * d_inv_sqrt[:, None] * d_inv_sqrt[None, :]

    # Node attributes g.ndata['attr'].
    x = jax.random.normal(k_x, (N, in_features), jnp.float32)

    params = init_params(k_p, in_features, hidden_features, out_features, num_layers)

    hg_out, h_out = gcn_forward(params, adj_norm, x)
    jax.block_until_ready((hg_out, h_out))

    assert hg_out.shape == (1, out_features)
    assert h_out.shape == (N, out_features)

    # Loose numerical sanity check vs f32 reference (kernel uses bf16 MXU inputs).
    hg_ref, h_ref = gcn_forward_ref(params, adj_norm, x)
    assert jnp.allclose(h_out, h_ref, rtol=5e-2, atol=5e-2)
    assert jnp.allclose(hg_out, hg_ref, rtol=5e-2, atol=5e-2)

    print("KERNEL_OK")
</pallas_src>

<mosaic_0001>
module attributes {stable_mosaic.version = 11 : i64} {
  func.func @kernel(%arg0: memref<16x16xbf16, #tpu.memory_space<vmem>>, %arg1: memref<16x128xf32, #tpu.memory_space<vmem>>, %arg2: memref<4x128x128xbf16, #tpu.memory_space<vmem>>, %arg3: memref<4x1x128xf32, #tpu.memory_space<vmem>>, %arg4: memref<1x128xf32, #tpu.memory_space<vmem>>, %arg5: memref<16x128xf32, #tpu.memory_space<vmem>>) attributes {dimension_semantics = [], scalar_prefetch = 0 : i64, scratch_operands = 0 : i64, tpu.core_type = #tpu.core_type<tc>} {
    %c0 = arith.constant 0 : index
    %c0_0 = arith.constant 0 : index
    %0 = vector.load %arg0[%c0, %c0_0] : memref<16x16xbf16, #tpu.memory_space<vmem>>, vector<16x16xbf16>
    %c0_1 = arith.constant 0 : index
    %c0_2 = arith.constant 0 : index
    %1 = vector.load %arg1[%c0_1, %c0_2] : memref<16x128xf32, #tpu.memory_space<vmem>>, vector<16x128xf32>
    %c0_3 = arith.constant 0 : index
    %c0_4 = arith.constant 0 : index
    %c0_5 = arith.constant 0 : index
    %2 = vector.load %arg2[%c0_3, %c0_4, %c0_5] : memref<4x128x128xbf16, #tpu.memory_space<vmem>>, vector<1x128x128xbf16>
    %3 = vector.shape_cast %2 : vector<1x128x128xbf16> to vector<128x128xbf16>
    %c0_6 = arith.constant 0 : index
    %c0_7 = arith.constant 0 : index
    %c0_8 = arith.constant 0 : index
    %4 = vector.load %arg3[%c0_6, %c0_7, %c0_8] : memref<4x1x128xf32, #tpu.memory_space<vmem>>, vector<1x1x128xf32>
    %5 = vector.shape_cast %4 : vector<1x1x128xf32> to vector<1x128xf32>
    %6 = arith.truncf %1 : vector<16x128xf32> to vector<16x128xbf16>
    %cst = arith.constant dense<0.000000e+00> : vector<16x128xf32>
    %7 = tpu.matmul %6, %3, %cst {dimension_numbers = #tpu.dot_dimension_numbers<[1], [0], [0], [1], [0, 0, 1, 1], [], []>} : vector<16x128xbf16>, vector<128x128xbf16>, vector<16x128xf32> -> vector<16x128xf32>
    %8 = arith.truncf %7 : vector<16x128xf32> to vector<16x128xbf16>
    %cst_9 = arith.constant dense<0.000000e+00> : vector<16x128xf32>
    %9 = tpu.matmul %0, %8, %cst_9 {dimension_numbers = #tpu.dot_dimension_numbers<[1], [0], [0], [1], [0, 0, 1, 1], [], []>} : vector<16x16xbf16>, vector<16x128xbf16>, vector<16x128xf32> -> vector<16x128xf32>
    %10 = vector.broadcast %5 : vector<1x128xf32> to vector<16x128xf32>
    %11 = arith.addf %9, %10 : vector<16x128xf32>
    %cst_10 = arith.constant 0.000000e+00 : f32
    %12 = vector.broadcast %cst_10 : f32 to vector<16x128xf32>
    %13 = arith.maximumf %11, %12 : vector<16x128xf32>
    %c1 = arith.constant 1 : index
    %c0_11 = arith.constant 0 : index
    %c0_12 = arith.constant 0 : index
    %14 = vector.load %arg2[%c1, %c0_11, %c0_12] : memref<4x128x128xbf16, #tpu.memory_space<vmem>>, vector<1x128x128xbf16>
    %15 = vector.shape_cast %14 : vector<1x128x128xbf16> to vector<128x128xbf16>
    %c1_13 = arith.constant 1 : index
    %c0_14 = arith.constant 0 : index
    %c0_15 = arith.constant 0 : index
    %16 = vector.load %arg3[%c1_13, %c0_14, %c0_15] : memref<4x1x128xf32, #tpu.memory_space<vmem>>, vector<1x1x128xf32>
    %17 = vector.shape_cast %16 : vector<1x1x128xf32> to vector<1x128xf32>
    %18 = arith.truncf %13 : vector<16x128xf32> to vector<16x128xbf16>
    %cst_16 = arith.constant dense<0.000000e+00> : vector<16x128xf32>
    %19 = tpu.matmul %18, %15, %cst_16 {dimension_numbers = #tpu.dot_dimension_numbers<[1], [0], [0], [1], [0, 0, 1, 1], [], []>} : vector<16x128xbf16>, vector<128x128xbf16>, vector<16x128xf32> -> vector<16x128xf32>
    %20 = arith.truncf %19 : vector<16x128xf32> to vector<16x128xbf16>
    %cst_17 = arith.constant dense<0.000000e+00> : vector<16x128xf32>
    %21 = tpu.matmul %0, %20, %cst_17 {dimension_numbers = #tpu.dot_dimension_numbers<[1], [0], [0], [1], [0, 0, 1, 1], [], []>} : vector<16x16xbf16>, vector<16x128xbf16>, vector<16x128xf32> -> vector<16x128xf32>
    %22 = vector.broadcast %17 : vector<1x128xf32> to vector<16x128xf32>
    %23 = arith.addf %21, %22 : vector<16x128xf32>
    %cst_18 = arith.constant 0.000000e+00 : f32
    %24 = vector.broadcast %cst_18 : f32 to vector<16x128xf32>
    %25 = arith.maximumf %23, %24 : vector<16x128xf32>
    %c0_19 = arith.constant 0 : index
    %c0_20 = arith.constant 0 : index
    %26 = vector.load %arg5[%c0_19, %c0_20] : memref<16x128xf32, #tpu.memory_space<vmem>>, vector<16x128xf32>
    tpu.vector_store %arg5[%c0_19, %c0_20], %25 {strides = array<i32>} : memref<16x128xf32, #tpu.memory_space<vmem>>, vector<16x128xf32>,
    %cst_21 = arith.constant dense<0.000000e+00> : vector<128xf32>
    %27 = vector.multi_reduction <add>, %25, %cst_21 [0] : vector<16x128xf32> to vector<128xf32>
    %28 = vector.shape_cast %27 : vector<128xf32> to vector<1x128xf32>
    %cst_22 = arith.constant 6.250000e-02 : f32
    %29 = vector.broadcast %cst_22 : f32 to vector<1x128xf32>
    %30 = arith.mulf %28, %29 : vector<1x128xf32>
    %c2 = arith.constant 2 : index
    %c0_23 = arith.constant 0 : index
    %c0_24 = arith.constant 0 : index
    %31 = vector.load %arg2[%c2, %c0_23, %c0_24] : memref<4x128x128xbf16, #tpu.memory_space<vmem>>, vector<1x128x128xbf16>
    %32 = vector.shape_cast %31 : vector<1x128x128xbf16> to vector<128x128xbf16>
    %c2_25 = arith.constant 2 : index
    %c0_26 = arith.constant 0 : index
    %c0_27 = arith.constant 0 : index
    %33 = vector.load %arg3[%c2_25, %c0_26, %c0_27] : memref<4x1x128xf32, #tpu.memory_space<vmem>>, vector<1x1x128xf32>
    %34 = vector.shape_cast %33 : vector<1x1x128xf32> to vector<1x128xf32>
    %c3 = arith.constant 3 : index
    %c0_28 = arith.constant 0 : index
    %c0_29 = arith.constant 0 : index
    %35 = vector.load %arg2[%c3, %c0_28, %c0_29] : memref<4x128x128xbf16, #tpu.memory_space<vmem>>, vector<1x128x128xbf16>
    %36 = vector.shape_cast %35 : vector<1x128x128xbf16> to vector<128x128xbf16>
    %c3_30 = arith.constant 3 : index
    %c0_31 = arith.constant 0 : index
    %c0_32 = arith.constant 0 : index
    %37 = vector.load %arg3[%c3_30, %c0_31, %c0_32] : memref<4x1x128xf32, #tpu.memory_space<vmem>>, vector<1x1x128xf32>
    %38 = vector.shape_cast %37 : vector<1x1x128xf32> to vector<1x128xf32>
    %39 = arith.truncf %30 : vector<1x128xf32> to vector<1x128xbf16>
    %cst_33 = arith.constant dense<0.000000e+00> : vector<1x128xf32>
    %40 = tpu.matmul %39, %32, %cst_33 {dimension_numbers = #tpu.dot_dimension_numbers<[1], [0], [0], [1], [0, 0, 1, 1], [], []>} : vector<1x128xbf16>, vector<128x128xbf16>, vector<1x128xf32> -> vector<1x128xf32>
    %41 = arith.addf %40, %34 : vector<1x128xf32>
    %cst_34 = arith.constant 0.000000e+00 : f32
    %42 = vector.broadcast %cst_34 : f32 to vector<1x128xf32>
    %43 = arith.maximumf %41, %42 : vector<1x128xf32>
    %44 = arith.truncf %43 : vector<1x128xf32> to vector<1x128xbf16>
    %cst_35 = arith.constant dense<0.000000e+00> : vector<1x128xf32>
    %45 = tpu.matmul %44, %36, %cst_35 {dimension_numbers = #tpu.dot_dimension_numbers<[1], [0], [0], [1], [0, 0, 1, 1], [], []>} : vector<1x128xbf16>, vector<128x128xbf16>, vector<1x128xf32> -> vector<1x128xf32>
    %46 = arith.addf %45, %38 : vector<1x128xf32>
    %c0_36 = arith.constant 0 : index
    %c0_37 = arith.constant 0 : index
    %47 = vector.load %arg4[%c0_36, %c0_37] : memref<1x128xf32, #tpu.memory_space<vmem>>, vector<1x128xf32>
    tpu.vector_store %arg4[%c0_36, %c0_37], %46 {strides = array<i32>} : memref<1x128xf32, #tpu.memory_space<vmem>>, vector<1x128xf32>,
    return
  }
}

</mosaic_0001>

<llo_original>
// kernel: tpu_custom_call.1
$region0: #{tpu_custom_call.1}
  #allocation0 [shape = 'u32[]', space=smem, size = 0x4, offset = 0x4, fixed_abs, tag = 'smem constant byte address 0x4 - core index']
  #allocation1 [shape = 'u32[144,128]{1,0:T(1,128)}', space=vmem, size = 0x12000, scoped, tag = 'internal scratch']
  %s0 = inlined_call_operand.hbm [shape: bf16[16,16], index: 0, kind: input, shape index: {}]
  %s1 = inlined_call_operand.hbm [shape: f32[16,128], index: 1, kind: input, shape index: {}]
  %s2 = inlined_call_operand.hbm [shape: bf16[4,128,128], index: 2, kind: input, shape index: {}]
  %s3 = inlined_call_operand.vmem [shape: f32[4,1,128], index: 3, kind: input, shape index: {}]
  %s4 = inlined_call_operand.hbm [shape: f32[1,128], index: 4, kind: output, shape index: {0}]
  %s5 = inlined_call_operand.hbm [shape: f32[16,128], index: 5, kind: output, shape index: {1}]
  %6 = xla_tuple %s4, %s5
  %s7 = sld [smem:[#allocation0]]
  $region46: #{tpu_custom_call.1} parent=0
    _
  %s9 = ssub.s32 1, %s7
  %s10 = scalar_select 0, %s9, %s7
  $region1: #{tpu_custom_call.1} parent=0
    #allocation2 [shape = 'u8[4096]{0}', space=vmem, size = 0x1000, scoped, tag = 'input window, operand 0, single buffered']
    #allocation3 [shape = 's32[1]{0}', space=sflag, size = 0x4, scoped, tag = 'scoped memory for tpu_custom_call.1']
    #allocation4 [shape = 's32[1]{0}', space=sflag, size = 0x4, scoped, tag = 'scoped memory for tpu_custom_call.1']
    #allocation5 [shape = 'u8[8192]{0}', space=vmem, size = 0x2000, scoped, tag = 'input window, operand 1, single buffered']
    #allocation6 [shape = 's32[1]{0}', space=sflag, size = 0x4, scoped, tag = 'scoped memory for tpu_custom_call.1']
    #allocation7 [shape = 'u8[131072]{0}', space=vmem, size = 0x20000, scoped, tag = 'input window, operand 2, single buffered']
    #allocation8 [shape = 'u8[512]{0}', space=vmem, size = 0x400, scoped, tag = 'output window, operand 0, single buffered']
    #allocation9 [shape = 'u8[8192]{0}', space=vmem, size = 0x2000, scoped, tag = 'output window, operand 1, single buffered']
    #allocation10 [shape = 's32[1]{0}', space=sflag, size = 0x4, scoped, tag = 'scoped memory for tpu_custom_call.1']
    %11 = vsyncpa [#allocation3], 0
    %12 = vsyncpa [#allocation6], 0
    %13 = vsyncpa [#allocation4], 0
    %14 = vsyncpa [#allocation10], 0
    // Predicated region
    $region2: #{tpu_custom_call.1} parent=1 // pred_check
      _
    $region3: #{tpu_custom_call.1} parent=1 // pred_check_branch
      %16 = sbr.rel (0) target = $region5
    $region4: #{tpu_custom_call.1} parent=1 // pred_region
      %s18 = ssub.s32 128, 128
      %19 = vsyncadd [#allocation3], %s18
      %s20 = sshll.u32 [#allocation2], 4
      %s21 = int_to_ptr.vmem [resolvable:$true] %s20
      %26 = dma.hbm_to_vmem [thread:$0]  %s0, 128, %s21, [#allocation3], 64, 64, 4
    $region5: #{tpu_custom_call.1} parent=1 // pred_fallthru
      _
    // Predicated region
    $region6: #{tpu_custom_call.1} parent=1 // pred_check
      _
    $region7: #{tpu_custom_call.1} parent=1 // pred_check_branch
      %28 = sbr.rel (0) target = $region9
    $region8: #{tpu_custom_call.1} parent=1 // pred_region
      %s30 = ssub.s32 256, 256
      %31 = vsyncadd [#allocation6], %s30
      %s32 = sshll.u32 [#allocation5], 4
      %s33 = int_to_ptr.vmem [resolvable:$true] %s32
      %38 = dma.hbm_to_vmem [thread:$0]  %s1, 256, %s33, [#allocation6], 128, 128, 8
    $region9: #{tpu_custom_call.1} parent=1 // pred_fallthru
      _
    // Predicated region
    $region10: #{tpu_custom_call.1} parent=1 // pred_check
      _
    $region11: #{tpu_custom_call.1} parent=1 // pred_check_branch
      %40 = sbr.rel (0) target = $region13
    $region12: #{tpu_custom_call.1} parent=1 // pred_region
      %s42 = ssub.s32 4096, 4096
      %43 = vsyncadd [#allocation6], %s42
      %s44 = sshll.u32 [#allocation7], 4
      %s45 = int_to_ptr.vmem [resolvable:$true] %s44
      %50 = dma.hbm_to_vmem [thread:$0]  %s2, 4096, %s45, [#allocation6], 64, 64, 4
    $region13: #{tpu_custom_call.1} parent=1 // pred_fallthru
      _
    // Predicated region
    $region14: #{tpu_custom_call.1} parent=1 // pred_check
      _
    $region15: #{tpu_custom_call.1} parent=1 // pred_check_branch
      %52 = sbr.rel (0) target = $region17
    $region16: #{tpu_custom_call.1} parent=1 // pred_region
      _
    $region17: #{tpu_custom_call.1} parent=1 // pred_fallthru
      _
    // Predicated region
    $region18: #{tpu_custom_call.1} parent=1 // pred_check
      _
    $region19: #{tpu_custom_call.1} parent=1 // pred_check_branch
      %54 = sbr.rel (0) target = $region21
    $region20: #{tpu_custom_call.1} parent=1 // pred_region
      %55 = dma.done [#allocation3], 128
    $region21: #{tpu_custom_call.1} parent=1 // pred_fallthru
      _
    // Predicated region
    $region22: #{tpu_custom_call.1} parent=1 // pred_check
      _
    $region23: #{tpu_custom_call.1} parent=1 // pred_check_branch
      %57 = sbr.rel (0) target = $region25
    $region24: #{tpu_custom_call.1} parent=1 // pred_region
      %58 = dma.done [#allocation6], 256
    $region25: #{tpu_custom_call.1} parent=1 // pred_fallthru
      _
    // Predicated region
    $region26: #{tpu_custom_call.1} parent=1 // pred_check
      _
    $region27: #{tpu_custom_call.1} parent=1 // pred_check_branch
      %60 = sbr.rel (0) target = $region29
    $region28: #{tpu_custom_call.1} parent=1 // pred_region
      %61 = dma.done [#allocation6], 4096
    $region29: #{tpu_custom_call.1} parent=1 // pred_fallthru
      _
    %v63 = vld [vmem:[#allocation2] sm:$0xf]
    %v64 = vld [vmem:[#allocation2 + $0x4] sm:$0xf]
    %v65 = vld [vmem:[#allocation5] sm:$0xff]
    %v66 = vld [vmem:[#allocation5 + $0x8] sm:$0xff]
    %v67 = vld [vmem:[#allocation7] sm:$0xf]
    %v68 = vld [vmem:[#allocation7 + $0x4] sm:$0xf]
    %v69 = vld [vmem:[#allocation7 + $0x8] sm:$0xf]
    %v70 = vld [vmem:[#allocation7 + $0xc] sm:$0xf]
    %v71 = vld [vmem:[#allocation7 + $0x10] sm:$0xf]
    %v72 = vld [vmem:[#allocation7 + $0x14] sm:$0xf]
    %v73 = vld [vmem:[#allocation7 + $0x18] sm:$0xf]
    %v74 = vld [vmem:[#allocation7 + $0x1c] sm:$0xf]
    %v75 = vld [vmem:[#allocation7 + $0x20] sm:$0xf]
    %v76 = vld [vmem:[#allocation7 + $0x24] sm:$0xf]
    %v77 = vld [vmem:[#allocation7 + $0x28] sm:$0xf]
    %v78 = vld [vmem:[#allocation7 + $0x2c] sm:$0xf]
    %v79 = vld [vmem:[#allocation7 + $0x30] sm:$0xf]
    %v80 = vld [vmem:[#allocation7 + $0x34] sm:$0xf]
    %v81 = vld [vmem:[#allocation7 + $0x38] sm:$0xf]
    %v82 = vld [vmem:[#allocation7 + $0x3c] sm:$0xf]
    %v83 = vld [vmem:[%s3] sm:$0x1]
    %v84 = vpack.c.bf16 %v66, %v65
    %v101 = vunpack.c.l.b16 %v67
    %v102 = vunpack.c.l.b16 %v68
    %v103 = vunpack.c.l.b16 %v69
    %v104 = vunpack.c.l.b16 %v70
    %v105 = vunpack.c.l.b16 %v71
    %v106 = vunpack.c.l.b16 %v72
    %v107 = vunpack.c.l.b16 %v73
    %v108 = vunpack.c.l.b16 %v74
    %v109 = vunpack.c.l.b16 %v75
    %v110 = vunpack.c.l.b16 %v76
    %v111 = vunpack.c.l.b16 %v77
    %v112 = vunpack.c.l.b16 %v78
    %v113 = vunpack.c.l.b16 %v79
    %v114 = vunpack.c.l.b16 %v80
    %v115 = vunpack.c.l.b16 %v81
    %v116 = vunpack.c.l.b16 %v82
    %v117 = vpack.c.b16 %v102, %v101
    %v118 = vpack.c.b16 %v104, %v103
    %v119 = vpack.c.b16 %v106, %v105
    %v120 = vpack.c.b16 %v108, %v107
    %v121 = vpack.c.b16 %v110, %v109
    %v122 = vpack.c.b16 %v112, %v111
    %v123 = vpack.c.b16 %v114, %v113
    %v124 = vpack.c.b16 %v116, %v115
    %133 = vmatprep.subr.bf16.mxu0 0
    %134 = vmatpush1.bf16.msra.mxu0 %v117
    %135 = vmatprep.subr.bf16.mxu0 0
    %136 = vmatpush1.bf16.msra.mxu0 %v118
    %137 = vmatprep.subr.bf16.mxu0 0
    %138 = vmatpush1.bf16.msra.mxu0 %v119
    %139 = vmatprep.subr.bf16.mxu0 0
    %140 = vmatpush1.bf16.msra.mxu0 %v120
    %141 = vmatprep.subr.bf16.mxu0 0
    %142 = vmatpush1.bf16.msra.mxu0 %v121
    %143 = vmatprep.subr.bf16.mxu0 0
    %144 = vmatpush1.bf16.msra.mxu0 %v122
    %145 = vmatprep.subr.bf16.mxu0 0
    %146 = vmatpush1.bf16.msra.mxu0 %v123
    %147 = vmatprep.subr.bf16.mxu0 0
    %148 = vmatpush1.bf16.msra.mxu0 %v124
    %149 = vmatprep.subr.bf16.mxu0 0
    %150 = vmatpush1.bf16.msra.mxu0 0
    %151 = vmatprep.subr.bf16.mxu0 0
    %152 = vmatpush1.bf16.msra.mxu0 0
    %153 = vmatprep.subr.bf16.mxu0 0
    %154 = vmatpush1.bf16.msra.mxu0 0
    %155 = vmatprep.subr.bf16.mxu0 0
    %156 = vmatpush1.bf16.msra.mxu0 0
    %157 = vmatprep.subr.bf16.mxu0 0
    %158 = vmatpush1.bf16.msra.mxu0 0
    %159 = vmatprep.subr.bf16.mxu0 0
    %160 = vmatpush1.bf16.msra.mxu0 0
    %161 = vmatprep.subr.bf16.mxu0 0
    %162 = vmatpush1.bf16.msra.mxu0 0
    %163 = vmatprep.subr.bf16.mxu0 0
    %164 = vmatpush1.bf16.msra.mxu0 0
    %165 = vmatprep.mubr.bf16.mxu0 0
    %166 = vmatmul.mubr.bf16.gmra.mrb[0].mxu0 %v84
    %v167 = vpop.f32.mrb[0].mxu0
    %v168 = vadd.f32 0.0, %v167
    %v169 = vpop.f32.mrb[0].mxu0
    %v170 = vpop.f32.mrb[0].mxu0
    %v171 = vadd.f32 0.0, %v170
    %v172 = vpop.f32.mrb[0].mxu0
    %173 = vdwg.mxu0
    %v174 = vpack.c.bf16 %v171, %v168
    %v176 = vlaneseq
    %v177 = vshrl.u32 %v176, 7
    %v178 = vsub.s32 0, %v177
    %v179 = vrot.slane %v83, %v178
    %v183 = vunpack.c.l.b16 %v63
    %v184 = vunpack.c.l.b16 %v64
    %v185 = vpack.c.b16 %v184, %v183
    %vm186 = vcmask 130048
    %v188 = vsel %vm186, %v185, 0
    %190 = vmatprep.subr.bf16.mxu0 0
    %191 = vmatpush1.bf16.msra.mxu0 %v174
    %192 = vmatprep.subr.bf16.mxu0 0
    %193 = vmatpush1.bf16.msra.mxu0 0
    %194 = vmatprep.subr.bf16.mxu0 0
    %195 = vmatpush1.bf16.msra.mxu0 0
    %196 = vmatprep.subr.bf16.mxu0 0
    %197 = vmatpush1.bf16.msra.mxu0 0
    %198 = vmatprep.subr.bf16.mxu0 0
    %199 = vmatpush1.bf16.msra.mxu0 0
    %200 = vmatprep.subr.bf16.mxu0 0
    %201 = vmatpush1.bf16.msra.mxu0 0
    %202 = vmatprep.subr.bf16.mxu0 0
    %203 = vmatpush1.bf16.msra.mxu0 0
    %204 = vmatprep.subr.bf16.mxu0 0
    %205 = vmatpush1.bf16.msra.mxu0 0
    %206 = vmatprep.subr.bf16.mxu0 0
    %207 = vmatpush1.bf16.msra.mxu0 0
    %208 = vmatprep.subr.bf16.mxu0 0
    %209 = vmatpush1.bf16.msra.mxu0 0
    %210 = vmatprep.subr.bf16.mxu0 0
    %211 = vmatpush1.bf16.msra.mxu0 0
    %212 = vmatprep.subr.bf16.mxu0 0
    %213 = vmatpush1.bf16.msra.mxu0 0
    %214 = vmatprep.subr.bf16.mxu0 0
    %215 = vmatpush1.bf16.msra.mxu0 0
    %216 = vmatprep.subr.bf16.mxu0 0
    %217 = vmatpush1.bf16.msra.mxu0 0
    %218 = vmatprep.subr.bf16.mxu0 0
    %219 = vmatpush1.bf16.msra.mxu0 0
    %220 = vmatprep.subr.bf16.mxu0 0
    %221 = vmatpush1.bf16.msra.mxu0 0
    %222 = vmatprep.mubr.bf16.mxu0 0
    %223 = vmatmul.mubr.bf16.gmra.mrb[0].mxu0 %v188
    %v224 = vpop.f32.mrb[0].mxu0
    %v225 = vadd.f32 %v179, %v224
    %v226 = vpop.f32.mrb[0].mxu0
    %v227 = vpop.f32.mrb[0].mxu0
    %v228 = vadd.f32 %v179, %v227
    %v229 = vpop.f32.mrb[0].mxu0
    %230 = vdwg.mxu0
    %v231 = vmax.f32 %v225, 0.0
    %v232 = vmax.f32 %v228, 0.0
    %s233 = scalar_lea.vmem [#allocation7], 64
    %v234 = vld [vmem:[%s233] sm:$0xf]
    %v235 = vld [vmem:[%s233 + $0x4] sm:$0xf]
    %v236 = vld [vmem:[%s233 + $0x8] sm:$0xf]
    %v237 = vld [vmem:[%s233 + $0xc] sm:$0xf]
    %v238 = vld [vmem:[%s233 + $0x10] sm:$0xf]
    %v239 = vld [vmem:[%s233 + $0x14] sm:$0xf]
    %v240 = vld [vmem:[%s233 + $0x18] sm:$0xf]
    %v241 = vld [vmem:[%s233 + $0x1c] sm:$0xf]
    %v242 = vld [vmem:[%s233 + $0x20] sm:$0xf]
    %v243 = vld [vmem:[%s233 + $0x24] sm:$0xf]
    %v244 = vld [vmem:[%s233 + $0x28] sm:$0xf]
    %v245 = vld [vmem:[%s233 + $0x2c] sm:$0xf]
    %v246 = vld [vmem:[%s233 + $0x30] sm:$0xf]
    %v247 = vld [vmem:[%s233 + $0x34] sm:$0xf]
    %v248 = vld [vmem:[%s233 + $0x38] sm:$0xf]
    %v249 = vld [vmem:[%s233 + $0x3c] sm:$0xf]
    %s250 = scalar_lea.vmem %s3, 1
    %v251 = vld [vmem:[%s250] sm:$0x1]
    %v252 = vpack.c.bf16 %v232, %v231
    %v269 = vunpack.c.l.b16 %v234
    %v270 = vunpack.c.l.b16 %v235
    %v271 = vunpack.c.l.b16 %v236
    %v272 = vunpack.c.l.b16 %v237
    %v273 = vunpack.c.l.b16 %v238
    %v274 = vunpack.c.l.b16 %v239
    %v275 = vunpack.c.l.b16 %v240
    %v276 = vunpack.c.l.b16 %v241
    %v277 = vunpack.c.l.b16 %v242
    %v278 = vunpack.c.l.b16 %v243
    %v279 = vunpack.c.l.b16 %v244
    %v280 = vunpack.c.l.b16 %v245
    %v281 = vunpack.c.l.b16 %v246
    %v282 = vunpack.c.l.b16 %v247
    %v283 = vunpack.c.l.b16 %v248
    %v284 = vunpack.c.l.b16 %v249
    %v285 = vpack.c.b16 %v270, %v269
    %v286 = vpack.c.b16 %v272, %v271
    %v287 = vpack.c.b16 %v274, %v273
    %v288 = vpack.c.b16 %v276, %v275
    %v289 = vpack.c.b16 %v278, %v277
    %v290 = vpack.c.b16 %v280, %v279
    %v291 = vpack.c.b16 %v282, %v281
    %v292 = vpack.c.b16 %v284, %v283
    %301 = vmatprep.subr.bf16.mxu0 0
    %302 = vmatpush1.bf16.msra.mxu0 %v285
    %303 = vmatprep.subr.bf16.mxu0 0
    %304 = vmatpush1.bf16.msra.mxu0 %v286
    %305 = vmatprep.subr.bf16.mxu0 0
    %306 = vmatpush1.bf16.msra.mxu0 %v287
    %307 = vmatprep.subr.bf16.mxu0 0
    %308 = vmatpush1.bf16.msra.mxu0 %v288
    %309 = vmatprep.subr.bf16.mxu0 0
    %310 = vmatpush1.bf16.msra.mxu0 %v289
    %311 = vmatprep.subr.bf16.mxu0 0
    %312 = vmatpush1.bf16.msra.mxu0 %v290
    %313 = vmatprep.subr.bf16.mxu0 0
    %314 = vmatpush1.bf16.msra.mxu0 %v291
    %315 = vmatprep.subr.bf16.mxu0 0
    %316 = vmatpush1.bf16.msra.mxu0 %v292
    %317 = vmatprep.subr.bf16.mxu0 0
    %318 = vmatpush1.bf16.msra.mxu0 0
    %319 = vmatprep.subr.bf16.mxu0 0
    %320 = vmatpush1.bf16.msra.mxu0 0
    %321 = vmatprep.subr.bf16.mxu0 0
    %322 = vmatpush1.bf16.msra.mxu0 0
    %323 = vmatprep.subr.bf16.mxu0 0
    %324 = vmatpush1.bf16.msra.mxu0 0
    %325 = vmatprep.subr.bf16.mxu0 0
    %326 = vmatpush1.bf16.msra.mxu0 0
    %327 = vmatprep.subr.bf16.mxu0 0
    %328 = vmatpush1.bf16.msra.mxu0 0
    %329 = vmatprep.subr.bf16.mxu0 0
    %330 = vmatpush1.bf16.msra.mxu0 0
    %331 = vmatprep.subr.bf16.mxu0 0
    %332 = vmatpush1.bf16.msra.mxu0 0
    %333 = vmatprep.mubr.bf16.mxu0 0
    %334 = vmatmul.mubr.bf16.gmra.mrb[0].mxu0 %v252
    %v335 = vpop.f32.mrb[0].mxu0
    %v336 = vadd.f32 0.0, %v335
    %v337 = vpop.f32.mrb[0].mxu0
    %v338 = vpop.f32.mrb[0].mxu0
    %v339 = vadd.f32 0.0, %v338
    %v340 = vpop.f32.mrb[0].mxu0
    %341 = vdwg.mxu0
    %v342 = vpack.c.bf16 %v339, %v336
    %v344 = vlaneseq
    %v345 = vshrl.u32 %v344, 7
    %v346 = vsub.s32 0, %v345
    %v347 = vrot.slane %v251, %v346
    %349 = vmatprep.subr.bf16.mxu0 0
    %350 = vmatpush1.bf16.msra.mxu0 %v342
    %351 = vmatprep.subr.bf16.mxu0 0
    %352 = vmatpush1.bf16.msra.mxu0 0
    %353 = vmatprep.subr.bf16.mxu0 0
    %354 = vmatpush1.bf16.msra.mxu0 0
    %355 = vmatprep.subr.bf16.mxu0 0
    %356 = vmatpush1.bf16.msra.mxu0 0
    %357 = vmatprep.subr.bf16.mxu0 0
    %358 = vmatpush1.bf16.msra.mxu0 0
    %359 = vmatprep.subr.bf16.mxu0 0
    %360 = vmatpush1.bf16.msra.mxu0 0
    %361 = vmatprep.subr.bf16.mxu0 0
    %362 = vmatpush1.bf16.msra.mxu0 0
    %363 = vmatprep.subr.bf16.mxu0 0
    %364 = vmatpush1.bf16.msra.mxu0 0
    %365 = vmatprep.subr.bf16.mxu0 0
    %366 = vmatpush1.bf16.msra.mxu0 0
    %367 = vmatprep.subr.bf16.mxu0 0
    %368 = vmatpush1.bf16.msra.mxu0 0
    %369 = vmatprep.subr.bf16.mxu0 0
    %370 = vmatpush1.bf16.msra.mxu0 0
    %371 = vmatprep.subr.bf16.mxu0 0
    %372 = vmatpush1.bf16.msra.mxu0 0
    %373 = vmatprep.subr.bf16.mxu0 0
    %374 = vmatpush1.bf16.msra.mxu0 0
    %375 = vmatprep.subr.bf16.mxu0 0
    %376 = vmatpush1.bf16.msra.mxu0 0
    %377 = vmatprep.subr.bf16.mxu0 0
    %378 = vmatpush1.bf16.msra.mxu0 0
    %379 = vmatprep.subr.bf16.mxu0 0
    %380 = vmatpush1.bf16.msra.mxu0 0
    %381 = vmatprep.mubr.bf16.mxu0 0
    %382 = vmatmul.mubr.bf16.gmra.mrb[0].mxu0 %v188
    %v383 = vpop.f32.mrb[0].mxu0
    %v384 = vadd.f32 %v347, %v383
    %v385 = vpop.f32.mrb[0].mxu0
    %v386 = vpop.f32.mrb[0].mxu0
    %v387 = vadd.f32 %v347, %v386
    %v388 = vpop.f32.mrb[0].mxu0
    %389 = vdwg.mxu0
    %v390 = vmax.f32 %v384, 0.0
    %v391 = vmax.f32 %v387, 0.0
    %392 = vst [vmem:[#allocation9] sm:$0xff] %v390
    %393 = vst [vmem:[#allocation9 + $0x8] sm:$0xff] %v391
    %v394 = vadd.f32 %v390, %v391
    %v395 = vrot.slane %v394, 4
    %v396 = vadd.f32 %v394, %v395
    %v397 = vrot.slane %v396, 2
    %v398 = vadd.f32 %v396, %v397
    %v399 = vrot.slane %v398, 1
    %v400 = vadd.f32 %v398, %v399
    %v401 = vmul.f32 %v400, 0.0625
    %s402 = scalar_lea.vmem [#allocation7], 128
    %v403 = vld [vmem:[%s402] sm:$0xf]
    %v404 = vld [vmem:[%s402 + $0x4] sm:$0xf]
    %v405 = vld [vmem:[%s402 + $0x8] sm:$0xf]
    %v406 = vld [vmem:[%s402 + $0xc] sm:$0xf]
    %v407 = vld [vmem:[%s402 + $0x10] sm:$0xf]
    %v408 = vld [vmem:[%s402 + $0x14] sm:$0xf]
    %v409 = vld [vmem:[%s402 + $0x18] sm:$0xf]
    %v410 = vld [vmem:[%s402 + $0x1c] sm:$0xf]
    %v411 = vld [vmem:[%s402 + $0x20] sm:$0xf]
    %v412 = vld [vmem:[%s402 + $0x24] sm:$0xf]
    %v413 = vld [vmem:[%s402 + $0x28] sm:$0xf]
    %v414 = vld [vmem:[%s402 + $0x2c] sm:$0xf]
    %v415 = vld [vmem:[%s402 + $0x30] sm:$0xf]
    %v416 = vld [vmem:[%s402 + $0x34] sm:$0xf]
    %v417 = vld [vmem:[%s402 + $0x38] sm:$0xf]
    %v418 = vld [vmem:[%s402 + $0x3c] sm:$0xf]
    %s419 = scalar_lea.vmem %s3, 2
    %v420 = vld [vmem:[%s419] sm:$0x1]
    %s421 = scalar_lea.vmem [#allocation7], 192
    %v422 = vld [vmem:[%s421] sm:$0xf]
    %v423 = vld [vmem:[%s421 + $0x4] sm:$0xf]
    %v424 = vld [vmem:[%s421 + $0x8] sm:$0xf]
    %v425 = vld [vmem:[%s421 + $0xc] sm:$0xf]
    %v426 = vld [vmem:[%s421 + $0x10] sm:$0xf]
    %v427 = vld [vmem:[%s421 + $0x14] sm:$0xf]
    %v428 = vld [vmem:[%s421 + $0x18] sm:$0xf]
    %v429 = vld [vmem:[%s421 + $0x1c] sm:$0xf]
    %v430 = vld [vmem:[%s421 + $0x20] sm:$0xf]
    %v431 = vld [vmem:[%s421 + $0x24] sm:$0xf]
    %v432 = vld [vmem:[%s421 + $0x28] sm:$0xf]
    %v433 = vld [vmem:[%s421 + $0x2c] sm:$0xf]
    %v434 = vld [vmem:[%s421 + $0x30] sm:$0xf]
    %v435 = vld [vmem:[%s421 + $0x34] sm:$0xf]
    %v436 = vld [vmem:[%s421 + $0x38] sm:$0xf]
    %v437 = vld [vmem:[%s421 + $0x3c] sm:$0xf]
    %s438 = scalar_lea.vmem %s3, 3
    %v439 = vld [vmem:[%s438] sm:$0x1]
    %v440 = vpack.c.bf16 %v401, %v401
    %v457 = vunpack.c.l.b16 %v403
    %v458 = vunpack.c.l.b16 %v404
    %v459 = vunpack.c.l.b16 %v405
    %v460 = vunpack.c.l.b16 %v406
    %v461 = vunpack.c.l.b16 %v407
    %v462 = vunpack.c.l.b16 %v408
    %v463 = vunpack.c.l.b16 %v409
    %v464 = vunpack.c.l.b16 %v410
    %v465 = vunpack.c.l.b16 %v411
    %v466 = vunpack.c.l.b16 %v412
    %v467 = vunpack.c.l.b16 %v413
    %v468 = vunpack.c.l.b16 %v414
    %v469 = vunpack.c.l.b16 %v415
    %v470 = vunpack.c.l.b16 %v416
    %v471 = vunpack.c.l.b16 %v417
    %v472 = vunpack.c.l.b16 %v418
    %v473 = vpack.c.b16 %v458, %v457
    %v474 = vpack.c.b16 %v460, %v459
    %v475 = vpack.c.b16 %v462, %v461
    %v476 = vpack.c.b16 %v464, %v463
    %v477 = vpack.c.b16 %v466, %v465
    %v478 = vpack.c.b16 %v468, %v467
    %v479 = vpack.c.b16 %v470, %v469
    %v480 = vpack.c.b16 %v472, %v471
    %489 = vmatprep.subr.bf16.mxu0 0
    %490 = vmatpush1.bf16.msra.mxu0 %v473
    %491 = vmatprep.subr.bf16.mxu0 0
    %492 = vmatpush1.bf16.msra.mxu0 %v474
    %493 = vmatprep.subr.bf16.mxu0 0
    %494 = vmatpush1.bf16.msra.mxu0 %v475
    %495 = vmatprep.subr.bf16.mxu0 0
    %496 = vmatpush1.bf16.msra.mxu0 %v476
    %497 = vmatprep.subr.bf16.mxu0 0
    %498 = vmatpush1.bf16.msra.mxu0 %v477
    %499 = vmatprep.subr.bf16.mxu0 0
    %500 = vmatpush1.bf16.msra.mxu0 %v478
    %501 = vmatprep.subr.bf16.mxu0 0
    %502 = vmatpush1.bf16.msra.mxu0 %v479
    %503 = vmatprep.subr.bf16.mxu0 0
    %504 = vmatpush1.bf16.msra.mxu0 %v480
    %505 = vmatprep.subr.bf16.mxu0 0
    %506 = vmatpush1.bf16.msra.mxu0 0
    %507 = vmatprep.subr.bf16.mxu0 0
    %508 = vmatpush1.bf16.msra.mxu0 0
    %509 = vmatprep.subr.bf16.mxu0 0
    %510 = vmatpush1.bf16.msra.mxu0 0
    %511 = vmatprep.subr.bf16.mxu0 0
    %512 = vmatpush1.bf16.msra.mxu0 0
    %513 = vmatprep.subr.bf16.mxu0 0
    %514 = vmatpush1.bf16.msra.mxu0 0
    %515 = vmatprep.subr.bf16.mxu0 0
    %516 = vmatpush1.bf16.msra.mxu0 0
    %517 = vmatprep.subr.bf16.mxu0 0
    %518 = vmatpush1.bf16.msra.mxu0 0
    %519 = vmatprep.subr.bf16.mxu0 0
    %520 = vmatpush1.bf16.msra.mxu0 0
    %521 = vmatprep.mubr.bf16.mxu0 0
    %522 = vmatmul.mubr.bf16.gmra.mrb[0].mxu0 %v440
    %v523 = vpop.f32.mrb[0].mxu0
    %v524 = vadd.f32 %v420, %v523
    %v525 = vpop.f32.mrb[0].mxu0
    %v526 = vpop.f32.mrb[0].mxu0
    %v527 = vpop.f32.mrb[0].mxu0
    %528 = vdwg.mxu0
    %v529 = vmax.f32 %v524, 0.0
    %v530 = vpack.c.bf16 %v529, %v529
    %v547 = vunpack.c.l.b16 %v422
    %v548 = vunpack.c.l.b16 %v423
    %v549 = vunpack.c.l.b16 %v424
    %v550 = vunpack.c.l.b16 %v425
    %v551 = vunpack.c.l.b16 %v426
    %v552 = vunpack.c.l.b16 %v427
    %v553 = vunpack.c.l.b16 %v428
    %v554 = vunpack.c.l.b16 %v429
    %v555 = vunpack.c.l.b16 %v430
    %v556 = vunpack.c.l.b16 %v431
    %v557 = vunpack.c.l.b16 %v432
    %v558 = vunpack.c.l.b16 %v433
    %v559 = vunpack.c.l.b16 %v434
    %v560 = vunpack.c.l.b16 %v435
    %v561 = vunpack.c.l.b16 %v436
    %v562 = vunpack.c.l.b16 %v437
    %v563 = vpack.c.b16 %v548, %v547
    %v564 = vpack.c.b16 %v550, %v549
    %v565 = vpack.c.b16 %v552, %v551
    %v566 = vpack.c.b16 %v554, %v553
    %v567 = vpack.c.b16 %v556, %v555
    %v568 = vpack.c.b16 %v558, %v557
    %v569 = vpack.c.b16 %v560, %v559
    %v570 = vpack.c.b16 %v562, %v561
    %579 = vmatprep.subr.bf16.mxu0 0
    %580 = vmatpush1.bf16.msra.mxu0 %v563
    %581 = vmatprep.subr.bf16.mxu0 0
    %582 = vmatpush1.bf16.msra.mxu0 %v564
    %583 = vmatprep.subr.bf16.mxu0 0
    %584 = vmatpush1.bf16.msra.mxu0 %v565
    %585 = vmatprep.subr.bf16.mxu0 0
    %586 = vmatpush1.bf16.msra.mxu0 %v566
    %587 = vmatprep.subr.bf16.mxu0 0
    %588 = vmatpush1.bf16.msra.mxu0 %v567
    %589 = vmatprep.subr.bf16.mxu0 0
    %590 = vmatpush1.bf16.msra.mxu0 %v568
    %591 = vmatprep.subr.bf16.mxu0 0
    %592 = vmatpush1.bf16.msra.mxu0 %v569
    %593 = vmatprep.subr.bf16.mxu0 0
    %594 = vmatpush1.bf16.msra.mxu0 %v570
    %595 = vmatprep.subr.bf16.mxu0 0
    %596 = vmatpush1.bf16.msra.mxu0 0
    %597 = vmatprep.subr.bf16.mxu0 0
    %598 = vmatpush1.bf16.msra.mxu0 0
    %599 = vmatprep.subr.bf16.mxu0 0
    %600 = vmatpush1.bf16.msra.mxu0 0
    %601 = vmatprep.subr.bf16.mxu0 0
    %602 = vmatpush1.bf16.msra.mxu0 0
    %603 = vmatprep.subr.bf16.mxu0 0
    %604 = vmatpush1.bf16.msra.mxu0 0
    %605 = vmatprep.subr.bf16.mxu0 0
    %606 = vmatpush1.bf16.msra.mxu0 0
    %607 = vmatprep.subr.bf16.mxu0 0
    %608 = vmatpush1.bf16.msra.mxu0 0
    %609 = vmatprep.subr.bf16.mxu0 0
    %610 = vmatpush1.bf16.msra.mxu0 0
    %611 = vmatprep.mubr.bf16.mxu0 0
    %612 = vmatmul.mubr.bf16.gmra.mrb[0].mxu0 %v530
    %v613 = vpop.f32.mrb[0].mxu0
    %v614 = vadd.f32 %v439, %v613
    %v615 = vpop.f32.mrb[0].mxu0
    %v616 = vpop.f32.mrb[0].mxu0
    %v617 = vpop.f32.mrb[0].mxu0
    %618 = vdwg.mxu0
    %619 = vst [vmem:[#allocation8] sm:$0x1] %v614
    // Predicated region
    $region30: #{tpu_custom_call.1} parent=1 // pred_check
      _
    $region31: #{tpu_custom_call.1} parent=1 // pred_check_branch
      %621 = sbr.rel (0) target = $region33
    $region32: #{tpu_custom_call.1} parent=1 // pred_region
      %s623 = ssub.s32 16, 16
      %624 = vsyncadd [#allocation4], %s623
      %s626 = sshll.u32 [#allocation8], 4
      %s627 = int_to_ptr.vmem [resolvable:$true] %s626
      %629 = dma.vmem_to_hbm [thread:$0]  %s627, 16, %s4, [#allocation4]
    $region33: #{tpu_custom_call.1} parent=1 // pred_fallthru
      _
    // Predicated region
    $region34: #{tpu_custom_call.1} parent=1 // pred_check
      _
    $region35: #{tpu_custom_call.1} parent=1 // pred_check_branch
      %631 = sbr.rel (0) target = $region37
    $region36: #{tpu_custom_call.1} parent=1 // pred_region
      %s633 = ssub.s32 256, 256
      %634 = vsyncadd [#allocation10], %s633
      %s635 = sshll.u32 [#allocation9], 4
      %s636 = int_to_ptr.vmem [resolvable:$true] %s635
      %641 = dma.vmem_to_hbm [thread:$0]  %s636, 256, %s5, [#allocation10], 128, 128, 8
    $region37: #{tpu_custom_call.1} parent=1 // pred_fallthru
      _
    // Predicated region
    $region38: #{tpu_custom_call.1} parent=1 // pred_check
      _
    $region39: #{tpu_custom_call.1} parent=1 // pred_check_branch
      %643 = sbr.rel (0) target = $region41
    $region40: #{tpu_custom_call.1} parent=1 // pred_region
      %644 = dma.done [#allocation4], 16
    $region41: #{tpu_custom_call.1} parent=1 // pred_fallthru
      _
    // Predicated region
    $region42: #{tpu_custom_call.1} parent=1 // pred_check
      _
    $region43: #{tpu_custom_call.1} parent=1 // pred_check_branch
      %646 = sbr.rel (0) target = $region45
    $region44: #{tpu_custom_call.1} parent=1 // pred_region
      %647 = dma.done [#allocation10], 256
    $region45: #{tpu_custom_call.1} parent=1 // pred_fallthru
      _
    %648 = vsyncpa [#allocation3], 1
    %649 = vsyncpa [#allocation6], 1
    %650 = vsyncpa [#allocation4], 1
    %651 = vsyncpa [#allocation10], 1

</llo_original>
